<compile_context>
chip_gen: v7x
topology: tpu7x:2x2x1
jax: 0.10.0
libtpu: 0.0.40
codegen_flags: <defaults>
</compile_context>

<pallas_src>
import functools

import jax
import jax.numpy as jnp
from jax.experimental import pallas as pl
from jax.experimental.pallas import tpu as pltpu

_LANE = 128          # lane width (vreg fast axis)
_CHUNK = 512         # in-kernel lane-chunk width: h = (32, 512) f32 = 16 vregs


def _round_up(x, m):
    return (x + m - 1) // m * m


def _mlp_kernel(x_ref, w1_ref, b1_ref, w2_ref, b2_ref,
                o1_ref, o2_ref, o3_ref, *, chunk, n_chunks):
    """One grid step: x_ref (2, tile) -> three (1, tile) output rows.

    Batch sits on the lane axis. The tile is processed in `chunk`-wide pieces
    so the (32, chunk) hidden activation stays register/VMEM-small instead of
    materializing a (32, tile) temporary.
    """
    w1 = w1_ref[...]                 # (32, 2)  PyTorch (out, in) layout
    b1 = b1_ref[...]                 # (32, 1)  lane-broadcast bias
    w2 = w2_ref[...]                 # (3, 32)
    b2 = b2_ref[...]                 # (3, 1)
    w1_x = w1[:, 0:1]                # (32, 1)
    w1_y = w1[:, 1:2]                # (32, 1)

    def process(c):
        off = pl.multiple_of(c * chunk, chunk)        # 128-aligned lane offset
        x = x_ref[:, pl.ds(off, chunk)]               # (2, chunk)
        # Layer 1 on the VPU: K=2 contraction as two broadcast FMAs + bias.
        h = jnp.maximum(w1_x * x[0:1, :] + w1_y * x[1:2, :] + b1, 0.0)  # (32, chunk)
        # Layer 2 on the MXU: (3,32) @ (32,chunk), f32 accumulate, then bias.
        o = jnp.dot(w2, h, preferred_element_type=jnp.float32) + b2     # (3, chunk)
        o1_ref[:, pl.ds(off, chunk)] = o[0:1, :]
        o2_ref[:, pl.ds(off, chunk)] = o[1:2, :]
        o3_ref[:, pl.ds(off, chunk)] = o[2:3, :]

    if n_chunks == 1:
        process(0)
    else:
        def body(c, carry):
            process(c)
            return carry
        jax.lax.fori_loop(0, n_chunks, body, 0)


def _choose_tile(n_lanes, tile_max):
    """Pick a lane tile: multiple of 128 (and of _CHUNK when > _CHUNK), capped
    by tile_max, and small enough to keep >= 2 grid steps when possible (v7x
    megacore / pipeline overlap)."""
    if n_lanes <= _CHUNK:
        return n_lanes                                  # already a 128 multiple
    tile_cap = max(_CHUNK, (tile_max // _CHUNK) * _CHUNK)
    target = _round_up(-(-n_lanes // 2), _CHUNK)        # aim for >= 2 grid steps
    return max(_CHUNK, min(tile_cap, target))


@functools.partial(jax.jit, static_argnames=("tile_max",))
def meta_model_forward_fm(boundary_fm, w1, b1, w2, b2, *, tile_max=65536):
    """Feature-major entry point. boundary_fm: (2, N) f32.
    Weights in PyTorch layouts: w1 (32, 2), b1 (32,), w2 (3, 32), b2 (3,).
    Returns (W1, W2, b), each (N, 1) — same as MetaModel.forward."""
    n = boundary_fm.shape[1]
    n_eff = max(n, 1)

    n_lanes = _round_up(n_eff, _LANE)
    tile = _choose_tile(n_lanes, tile_max)
    chunk = min(_CHUNK, tile)                    # tile % chunk == 0 by construction
    n_chunks = tile // chunk
    grid = (pl.cdiv(n_eff, tile),)               # ragged last block is fine:
    # columns are independent; OOB input lanes read unspecified data but their
    # output lanes are clipped on the writeback DMA.

    # Pipeline VMEM: in blocks 2*(8*tile*4) + out blocks 3*2*(8*tile*4) = 256*tile.
    vmem_limit = int(min(64 << 20, max(32 << 20, 288 * tile + (4 << 20))))

    b1c = b1.reshape(32, 1)
    b2c = b2.reshape(3, 1)

    kernel = functools.partial(_mlp_kernel, chunk=chunk, n_chunks=n_chunks)

    out1, out2, out3 = pl.pallas_call(
        kernel,
        out_shape=(
            jax.ShapeDtypeStruct((1, n), jnp.float32),
            jax.ShapeDtypeStruct((1, n), jnp.float32),
            jax.ShapeDtypeStruct((1, n), jnp.float32),
        ),
        grid=grid,
        in_specs=[
            pl.BlockSpec((2, tile), lambda i: (0, i)),    # batch tile (lane-dense)
            pl.BlockSpec((32, 2), lambda i: (0, 0)),      # w1 (VMEM-resident)
            pl.BlockSpec((32, 1), lambda i: (0, 0)),      # b1 (resident)
            pl.BlockSpec((3, 32), lambda i: (0, 0)),      # w2 (resident)
            pl.BlockSpec((3, 1), lambda i: (0, 0)),       # b2 (resident)
        ],
        out_specs=(
            pl.BlockSpec((1, tile), lambda i: (0, i)),
            pl.BlockSpec((1, tile), lambda i: (0, i)),
            pl.BlockSpec((1, tile), lambda i: (0, i)),
        ),
        compiler_params=pltpu.CompilerParams(
            dimension_semantics=("parallel",),
            vmem_limit_bytes=vmem_limit,
        ),
    )(boundary_fm, w1, b1c, w2, b2c)

    # (1, N) -> (N, 1): same contiguous layout, metadata-only reshape.
    W1 = out1.reshape(n, 1)
    W2 = out2.reshape(n, 1)
    b = out3.reshape(n, 1)
    return W1, W2, b


@functools.partial(jax.jit, static_argnames=("tile_max",))
def meta_model_forward(boundary, w1, b1, w2, b2, *, tile_max=65536):
    """boundary: (N, 2) f32 — same signature as MetaModel.forward."""
    # TODO(synk): this transpose is a full extra HBM read+write pass (layout
    # plumbing only); producers that can supply boundary feature-major (2, N)
    # should call meta_model_forward_fm directly.
    return meta_model_forward_fm(boundary.T, w1, b1, w2, b2, tile_max=tile_max)


def init_params(key):
    """Deterministic params in PyTorch nn.Linear layouts (out_features, in_features)."""
    k1, k2, k3, k4 = jax.random.split(key, 4)
    lim1 = 1.0 / jnp.sqrt(2.0)            # fan_in = 2
    lim2 = 1.0 / jnp.sqrt(32.0)           # fan_in = 32
    w1 = jax.random.uniform(k1, (32, 2), jnp.float32, -lim1, lim1)
    b1 = jax.random.uniform(k2, (32,), jnp.float32, -lim1, lim1)
    w2 = jax.random.uniform(k3, (3, 32), jnp.float32, -lim2, lim2)
    b2 = jax.random.uniform(k4, (3,), jnp.float32, -lim2, lim2)
    return w1, b1, w2, b2


def _reference(boundary, w1, b1, w2, b2):
    h = jnp.maximum(boundary @ w1.T + b1, 0.0)
    return h @ w2.T + b2


if __name__ == "__main__":
    key = jax.random.PRNGKey(0)
    kx, kp = jax.random.split(key)
    w1, b1, w2, b2 = init_params(kp)

    ok = True
    # n=8: single block, block wider than array (clipped stores).
    # n=1000: 2-step grid with a ragged last block.
    # n=2500: multi-step grid + multi-chunk in-kernel fori_loop + ragged tail.
    for n in (8, 1000, 2500):
        boundary = jax.random.normal(jax.random.fold_in(kx, n), (n, 2), jnp.float32)
        W1, W2, b = meta_model_forward(boundary, w1, b1, w2, b2)
        jax.block_until_ready((W1, W2, b))

        ref = _reference(boundary, w1, b1, w2, b2)
        ok &= W1.shape == (n, 1) and W2.shape == (n, 1) and b.shape == (n, 1)
        ok &= bool(jnp.allclose(W1, ref[:, 0:1], atol=1e-5))
        ok &= bool(jnp.allclose(W2, ref[:, 1:2], atol=1e-5))
        ok &= bool(jnp.allclose(b, ref[:, 2:3], atol=1e-5))

    if not ok:
        raise SystemExit("mismatch vs reference")
    print("KERNEL_OK")
</pallas_src>

<mosaic_0001>
module attributes {stable_mosaic.version = 11 : i64} {
  func.func @_mlp_kernel(%arg0: i32, %arg1: memref<2x128xf32, #tpu.memory_space<vmem>>, %arg2: memref<32x2xf32, #tpu.memory_space<vmem>>, %arg3: memref<32x1xf32, #tpu.memory_space<vmem>>, %arg4: memref<3x32xf32, #tpu.memory_space<vmem>>, %arg5: memref<3x1xf32, #tpu.memory_space<vmem>>, %arg6: memref<1x128xf32, #tpu.memory_space<vmem>>, %arg7: memref<1x128xf32, #tpu.memory_space<vmem>>, %arg8: memref<1x128xf32, #tpu.memory_space<vmem>>) attributes {dimension_semantics = [#tpu.dimension_semantics<parallel>], iteration_bounds = array<i64: 1>, scalar_prefetch = 0 : i64, scratch_operands = 0 : i64, tpu.core_type = #tpu.core_type<tc>, window_params = [{transform_indices = @transform_0, window_bounds = array<i64: 2, 128>}, {pipeline_mode = #tpu.pipeline_mode<synchronous>, transform_indices = @transform_1, window_bounds = array<i64: 32, 2>}, {pipeline_mode = #tpu.pipeline_mode<synchronous>, transform_indices = @transform_2, window_bounds = array<i64: 32, 1>}, {pipeline_mode = #tpu.pipeline_mode<synchronous>, transform_indices = @transform_3, window_bounds = array<i64: 3, 32>}, {pipeline_mode = #tpu.pipeline_mode<synchronous>, transform_indices = @transform_4, window_bounds = array<i64: 3, 1>}, {transform_indices = @transform_5, window_bounds = array<i64: 1, 128>}, {transform_indices = @transform_6, window_bounds = array<i64: 1, 128>}, {transform_indices = @transform_7, window_bounds = array<i64: 1, 128>}]} {
    %c0 = arith.constant 0 : index
    %c0_0 = arith.constant 0 : index
    %0 = vector.load %arg2[%c0, %c0_0] : memref<32x2xf32, #tpu.memory_space<vmem>>, vector<32x2xf32>
    %c0_1 = arith.constant 0 : index
    %c0_2 = arith.constant 0 : index
    %1 = vector.load %arg3[%c0_1, %c0_2] : memref<32x1xf32, #tpu.memory_space<vmem>>, vector<32x1xf32>
    %c0_3 = arith.constant 0 : index
    %c0_4 = arith.constant 0 : index
    %2 = vector.load %arg4[%c0_3, %c0_4] : memref<3x32xf32, #tpu.memory_space<vmem>>, vector<3x32xf32>
    %c0_5 = arith.constant 0 : index
    %c0_6 = arith.constant 0 : index
    %3 = vector.load %arg5[%c0_5, %c0_6] : memref<3x1xf32, #tpu.memory_space<vmem>>, vector<3x1xf32>
    %4 = vector.extract_strided_slice %0 {offsets = [0, 0], sizes = [32, 1], strides = [1, 1]} : vector<32x2xf32> to vector<32x1xf32>
    %5 = vector.extract_strided_slice %0 {offsets = [0, 1], sizes = [32, 1], strides = [1, 1]} : vector<32x2xf32> to vector<32x1xf32>
    %c0_i32 = arith.constant 0 : i32
    %6 = tpu.assume_multiple %c0_i32, 128 : i32
    %c0_7 = arith.constant 0 : index
    %7 = arith.index_cast %6 : i32 to index
    %8 = vector.load %arg1[%c0_7, %7] : memref<2x128xf32, #tpu.memory_space<vmem>>, vector<2x128xf32>
    %9 = vector.extract_strided_slice %8 {offsets = [0, 0], sizes = [1, 128], strides = [1, 1]} : vector<2x128xf32> to vector<1x128xf32>
    %10 = vector.broadcast %4 : vector<32x1xf32> to vector<32x128xf32>
    %11 = vector.broadcast %9 : vector<1x128xf32> to vector<32x128xf32>
    %12 = arith.mulf %10, %11 : vector<32x128xf32>
    %13 = vector.extract_strided_slice %8 {offsets = [1, 0], sizes = [1, 128], strides = [1, 1]} : vector<2x128xf32> to vector<1x128xf32>
    %14 = vector.broadcast %5 : vector<32x1xf32> to vector<32x128xf32>
    %15 = vector.broadcast %13 : vector<1x128xf32> to vector<32x128xf32>
    %16 = arith.mulf %14, %15 : vector<32x128xf32>
    %17 = arith.addf %12, %16 : vector<32x128xf32>
    %18 = vector.broadcast %1 : vector<32x1xf32> to vector<32x128xf32>
    %19 = arith.addf %17, %18 : vector<32x128xf32>
    %cst = arith.constant 0.000000e+00 : f32
    %20 = vector.broadcast %cst : f32 to vector<32x128xf32>
    %21 = arith.maximumf %19, %20 : vector<32x128xf32>
    %cst_8 = arith.constant dense<0.000000e+00> : vector<3x128xf32>
    %22 = tpu.matmul %2, %21, %cst_8 {dimension_numbers = #tpu.dot_dimension_numbers<[1], [0], [0], [1], [0, 0, 1, 1], [], []>} : vector<3x32xf32>, vector<32x128xf32>, vector<3x128xf32> -> vector<3x128xf32>
    %23 = vector.broadcast %3 : vector<3x1xf32> to vector<3x128xf32>
    %24 = arith.addf %22, %23 : vector<3x128xf32>
    %25 = vector.extract_strided_slice %24 {offsets = [0, 0], sizes = [1, 128], strides = [1, 1]} : vector<3x128xf32> to vector<1x128xf32>
    %c0_9 = arith.constant 0 : index
    %26 = arith.index_cast %6 : i32 to index
    %27 = vector.load %arg6[%c0_9, %26] : memref<1x128xf32, #tpu.memory_space<vmem>>, vector<1x128xf32>
    tpu.vector_store %arg6[%c0_9, %26], %25 {strides = array<i32>} : memref<1x128xf32, #tpu.memory_space<vmem>>, vector<1x128xf32>,
    %28 = vector.extract_strided_slice %24 {offsets = [1, 0], sizes = [1, 128], strides = [1, 1]} : vector<3x128xf32> to vector<1x128xf32>
    %c0_10 = arith.constant 0 : index
    %29 = arith.index_cast %6 : i32 to index
    %30 = vector.load %arg7[%c0_10, %29] : memref<1x128xf32, #tpu.memory_space<vmem>>, vector<1x128xf32>
    tpu.vector_store %arg7[%c0_10, %29], %28 {strides = array<i32>} : memref<1x128xf32, #tpu.memory_space<vmem>>, vector<1x128xf32>,
    %31 = vector.extract_strided_slice %24 {offsets = [2, 0], sizes = [1, 128], strides = [1, 1]} : vector<3x128xf32> to vector<1x128xf32>
    %c0_11 = arith.constant 0 : index
    %32 = arith.index_cast %6 : i32 to index
    %33 = vector.load %arg8[%c0_11, %32] : memref<1x128xf32, #tpu.memory_space<vmem>>, vector<1x128xf32>
    tpu.vector_store %arg8[%c0_11, %32], %31 {strides = array<i32>} : memref<1x128xf32, #tpu.memory_space<vmem>>, vector<1x128xf32>,
    return
  }
  func.func @transform_0(%arg0: i32) -> (i32, i32) {
    %c0_i32 = arith.constant 0 : i32
    %c0_i32_0 = arith.constant 0 : i32
    return %c0_i32, %arg0 : i32, i32
  }
  func.func @transform_1(%arg0: i32) -> (i32, i32) {
    %c0_i32 = arith.constant 0 : i32
    %c0_i32_0 = arith.constant 0 : i32
    %c0_i32_1 = arith.constant 0 : i32
    return %c0_i32, %c0_i32_0 : i32, i32
  }
  func.func @transform_2(%arg0: i32) -> (i32, i32) {
    %c0_i32 = arith.constant 0 : i32
    %c0_i32_0 = arith.constant 0 : i32
    %c0_i32_1 = arith.constant 0 : i32
    return %c0_i32, %c0_i32_0 : i32, i32
  }
  func.func @transform_3(%arg0: i32) -> (i32, i32) {
    %c0_i32 = arith.constant 0 : i32
    %c0_i32_0 = arith.constant 0 : i32
    %c0_i32_1 = arith.constant 0 : i32
    return %c0_i32, %c0_i32_0 : i32, i32
  }
  func.func @transform_4(%arg0: i32) -> (i32, i32) {
    %c0_i32 = arith.constant 0 : i32
    %c0_i32_0 = arith.constant 0 : i32
    %c0_i32_1 = arith.constant 0 : i32
    return %c0_i32, %c0_i32_0 : i32, i32
  }
  func.func @transform_5(%arg0: i32) -> (i32, i32) {
    %c0_i32 = arith.constant 0 : i32
    %c0_i32_0 = arith.constant 0 : i32
    return %c0_i32, %arg0 : i32, i32
  }
  func.func @transform_6(%arg0: i32) -> (i32, i32) {
    %c0_i32 = arith.constant 0 : i32
    %c0_i32_0 = arith.constant 0 : i32
    return %c0_i32, %arg0 : i32, i32
  }
  func.func @transform_7(%arg0: i32) -> (i32, i32) {
    %c0_i32 = arith.constant 0 : i32
    %c0_i32_0 = arith.constant 0 : i32
    return %c0_i32, %arg0 : i32, i32
  }
}

</mosaic_0001>

<llo_original>
// kernel: meta_model_forward_fm.1
$region0: #{meta_model_forward_fm.1}
  #allocation0 [shape = 'u32[]', space=smem, size = 0x4, offset = 0x4, fixed_abs, tag = 'smem constant byte address 0x4 - core index']
  #allocation1 [shape = 'u32[144,128]{1,0:T(1,128)}', space=vmem, size = 0x12000, scoped, tag = 'internal scratch']
  %s0 = inlined_call_operand.vmem [shape: f32[2,8], index: 0, kind: input, shape index: {}]
  %s1 = inlined_call_operand.vmem [shape: f32[32,2], index: 1, kind: input, shape index: {}]
  %s2 = inlined_call_operand.vmem [shape: f32[32,1], index: 2, kind: input, shape index: {}]
  %s3 = inlined_call_operand.vmem [shape: f32[3,32], index: 3, kind: input, shape index: {}]
  %s4 = inlined_call_operand.vmem [shape: f32[3,1], index: 4, kind: input, shape index: {}]
  %s5 = inlined_call_operand.hbm [shape: f32[1,8], index: 5, kind: output, shape index: {0}]
  %s6 = inlined_call_operand.hbm [shape: f32[1,8], index: 6, kind: output, shape index: {1}]
  %s7 = inlined_call_operand.hbm [shape: f32[1,8], index: 7, kind: output, shape index: {2}]
  %8 = xla_tuple %s5, %s6, %s7
  %s9 = sld [smem:[#allocation0]]
  $region46: #{meta_model_forward_fm.1} parent=0
    _
  %s11 = ssub.s32 1, %s9
  %s12 = scalar_select 0, %s11, %s9
  $region1: #{meta_model_forward_fm.1} parent=0
    #allocation2 [shape = 'u8[512]{0}', space=vmem, size = 0x400, scoped, tag = 'output window, operand 0, single buffered']
    #allocation3 [shape = 's32[1]{0}', space=sflag, size = 0x4, scoped, tag = 'scoped memory for meta_model_forward_fm.1']
    #allocation4 [shape = 'u8[512]{0}', space=vmem, size = 0x400, scoped, tag = 'output window, operand 1, single buffered']
    #allocation5 [shape = 's32[1]{0}', space=sflag, size = 0x4, scoped, tag = 'scoped memory for meta_model_forward_fm.1']
    #allocation6 [shape = 'u8[512]{0}', space=vmem, size = 0x400, scoped, tag = 'output window, operand 2, single buffered']
    %13 = vsyncpa [#allocation3], 0
    %14 = vsyncpa [#allocation5], 0
    // Predicated region
    $region2: #{meta_model_forward_fm.1} parent=1 // pred_check
      _
    $region3: #{meta_model_forward_fm.1} parent=1 // pred_check_branch
      %16 = sbr.rel (0) target = $region5
    $region4: #{meta_model_forward_fm.1} parent=1 // pred_region
      _
    $region5: #{meta_model_forward_fm.1} parent=1 // pred_fallthru
      _
    // Predicated region
    $region6: #{meta_model_forward_fm.1} parent=1 // pred_check
      _
    $region7: #{meta_model_forward_fm.1} parent=1 // pred_check_branch
      %18 = sbr.rel (0) target = $region9
    $region8: #{meta_model_forward_fm.1} parent=1 // pred_region
      _
    $region9: #{meta_model_forward_fm.1} parent=1 // pred_fallthru
      _
    // Predicated region
    $region10: #{meta_model_forward_fm.1} parent=1 // pred_check
      _
    $region11: #{meta_model_forward_fm.1} parent=1 // pred_check_branch
      %20 = sbr.rel (0) target = $region13
    $region12: #{meta_model_forward_fm.1} parent=1 // pred_region
      _
    $region13: #{meta_model_forward_fm.1} parent=1 // pred_fallthru
      _
    // Predicated region
    $region14: #{meta_model_forward_fm.1} parent=1 // pred_check
      _
    $region15: #{meta_model_forward_fm.1} parent=1 // pred_check_branch
      %22 = sbr.rel (0) target = $region17
    $region16: #{meta_model_forward_fm.1} parent=1 // pred_region
      _
    $region17: #{meta_model_forward_fm.1} parent=1 // pred_fallthru
      _
    // Predicated region
    $region18: #{meta_model_forward_fm.1} parent=1 // pred_check
      _
    $region19: #{meta_model_forward_fm.1} parent=1 // pred_check_branch
      %24 = sbr.rel (0) target = $region21
    $region20: #{meta_model_forward_fm.1} parent=1 // pred_region
      _
    $region21: #{meta_model_forward_fm.1} parent=1 // pred_fallthru
      _
    %v25 = vld [vmem:[%s1] sm:$0xff]
    %v26 = vld [vmem:[%s1 + $0x8] sm:$0xff]
    %v27 = vld [vmem:[%s1 + $0x10] sm:$0xff]
    %v28 = vld [vmem:[%s1 + $0x18] sm:$0xff]
    %v29 = vld [vmem:[%s2] sm:$0xff]
    %v30 = vld [vmem:[%s2 + $0x8] sm:$0xff]
    %v31 = vld [vmem:[%s2 + $0x10] sm:$0xff]
    %v32 = vld [vmem:[%s2 + $0x18] sm:$0xff]
    %v33 = vld [vmem:[%s3] sm:$0x7]
    %v34 = vld [vmem:[%s4] sm:$0x7]
    %v35 = vld [vmem:[%s0] sm:$0x3]
    %37 = vset.pattern.permute.xlu0 0
    %38 = vperm.xlu0 %37, %v25
    %v39 = vpop.permute.xlu0 %38
    %42 = vset.pattern.permute.xlu0 0
    %43 = vperm.xlu0 %42, %v26
    %v44 = vpop.permute.xlu0 %43
    %47 = vset.pattern.permute.xlu0 0
    %48 = vperm.xlu0 %47, %v27
    %v49 = vpop.permute.xlu0 %48
    %52 = vset.pattern.permute.xlu0 0
    %53 = vperm.xlu0 %52, %v28
    %v54 = vpop.permute.xlu0 %53
    %v56 = vlaneseq
    %v57 = vshrl.u32 %v56, 7
    %v58 = vsub.s32 0, %v57
    %v59 = vrot.slane %v35, %v58
    %v60 = vmul.f32 %v39, %v59
    %v61 = vmul.f32 %v44, %v59
    %v62 = vmul.f32 %v49, %v59
    %v63 = vmul.f32 %v54, %v59
    %64 = vset.pattern.permute.xlu0 1
    %65 = vperm.xlu0 %64, %v25
    %v66 = vpop.permute.xlu0 %65
    %68 = vset.pattern.permute.xlu0 1
    %69 = vperm.xlu0 %68, %v26
    %v70 = vpop.permute.xlu0 %69
    %72 = vset.pattern.permute.xlu0 1
    %73 = vperm.xlu0 %72, %v27
    %v74 = vpop.permute.xlu0 %73
    %76 = vset.pattern.permute.xlu0 1
    %77 = vperm.xlu0 %76, %v28
    %v78 = vpop.permute.xlu0 %77
    %v80 = vlaneseq
    %v81 = vshrl.u32 %v80, 7
    %v82 = vsub.s32 1, %v81
    %v83 = vrot.slane %v35, %v82
    %v84 = vmul.f32 %v66, %v83
    %v85 = vmul.f32 %v70, %v83
    %v86 = vmul.f32 %v74, %v83
    %v87 = vmul.f32 %v78, %v83
    %v88 = vadd.f32 %v60, %v84
    %v89 = vadd.f32 %v61, %v85
    %v90 = vadd.f32 %v62, %v86
    %v91 = vadd.f32 %v63, %v87
    %93 = vset.pattern.permute.xlu0 0
    %94 = vperm.xlu0 %93, %v29
    %v95 = vpop.permute.xlu0 %94
    %98 = vset.pattern.permute.xlu0 0
    %99 = vperm.xlu0 %98, %v30
    %v100 = vpop.permute.xlu0 %99
    %103 = vset.pattern.permute.xlu0 0
    %104 = vperm.xlu0 %103, %v31
    %v105 = vpop.permute.xlu0 %104
    %108 = vset.pattern.permute.xlu0 0
    %109 = vperm.xlu0 %108, %v32
    %v110 = vpop.permute.xlu0 %109
    %v112 = vadd.f32 %v88, %v95
    %v113 = vadd.f32 %v89, %v100
    %v114 = vadd.f32 %v90, %v105
    %v115 = vadd.f32 %v91, %v110
    %v116 = vmax.f32 %v112, 0.0
    %v117 = vmax.f32 %v113, 0.0
    %v118 = vmax.f32 %v114, 0.0
    %v119 = vmax.f32 %v115, 0.0
    %121 = vset.pattern.permute.xlu0 0
    %122 = vperm.xlu0 %121, %v34
    %v123 = vpop.permute.xlu0 %122
    %vm125 = vcmask 261120
    %v127 = vsel %vm125, %v33, 0
    %129 = vmatprep.subr.mxu0 0.0
    %130 = vmatpush1.msra.mxu0 %v116
    %131 = vmatprep.subr.mxu0 0.0
    %132 = vmatpush1.msra.mxu0 %v117
    %133 = vmatprep.subr.mxu0 0.0
    %134 = vmatpush1.msra.mxu0 %v118
    %135 = vmatprep.subr.mxu0 0.0
    %136 = vmatpush1.msra.mxu0 %v119
    %137 = vmatprep.subr.mxu0 0.0
    %138 = vmatpush1.msra.mxu0 0.0
    %139 = vmatprep.subr.mxu0 0.0
    %140 = vmatpush1.msra.mxu0 0.0
    %141 = vmatprep.subr.mxu0 0.0
    %142 = vmatpush1.msra.mxu0 0.0
    %143 = vmatprep.subr.mxu0 0.0
    %144 = vmatpush1.msra.mxu0 0.0
    %145 = vmatprep.subr.mxu0 0.0
    %146 = vmatpush1.msra.mxu0 0.0
    %147 = vmatprep.subr.mxu0 0.0
    %148 = vmatpush1.msra.mxu0 0.0
    %149 = vmatprep.subr.mxu0 0.0
    %150 = vmatpush1.msra.mxu0 0.0
    %151 = vmatprep.subr.mxu0 0.0
    %152 = vmatpush1.msra.mxu0 0.0
    %153 = vmatprep.subr.mxu0 0.0
    %154 = vmatpush1.msra.mxu0 0.0
    %155 = vmatprep.subr.mxu0 0.0
    %156 = vmatpush1.msra.mxu0 0.0
    %157 = vmatprep.subr.mxu0 0.0
    %158 = vmatpush1.msra.mxu0 0.0
    %159 = vmatprep.subr.mxu0 0.0
    %160 = vmatpush1.msra.mxu0 0.0
    %161 = vmatprep.subr.mxu0 0.0
    %162 = vmatpush1.msra.mxu0 0.0
    %163 = vmatprep.subr.mxu0 0.0
    %164 = vmatpush1.msra.mxu0 0.0
    %165 = vmatprep.subr.mxu0 0.0
    %166 = vmatpush1.msra.mxu0 0.0
    %167 = vmatprep.subr.mxu0 0.0
    %168 = vmatpush1.msra.mxu0 0.0
    %169 = vmatprep.subr.mxu0 0.0
    %170 = vmatpush1.msra.mxu0 0.0
    %171 = vmatprep.subr.mxu0 0.0
    %172 = vmatpush1.msra.mxu0 0.0
    %173 = vmatprep.subr.mxu0 0.0
    %174 = vmatpush1.msra.mxu0 0.0
    %175 = vmatprep.subr.mxu0 0.0
    %176 = vmatpush1.msra.mxu0 0.0
    %177 = vmatprep.subr.mxu0 0.0
    %178 = vmatpush1.msra.mxu0 0.0
    %179 = vmatprep.subr.mxu0 0.0
    %180 = vmatpush1.msra.mxu0 0.0
    %181 = vmatprep.subr.mxu0 0.0
    %182 = vmatpush1.msra.mxu0 0.0
    %183 = vmatprep.subr.mxu0 0.0
    %184 = vmatpush1.msra.mxu0 0.0
    %185 = vmatprep.subr.mxu0 0.0
    %186 = vmatpush1.msra.mxu0 0.0
    %187 = vmatprep.subr.mxu0 0.0
    %188 = vmatpush1.msra.mxu0 0.0
    %189 = vmatprep.subr.mxu0 0.0
    %190 = vmatpush1.msra.mxu0 0.0
    %191 = vmatprep.subr.mxu0 0.0
    %192 = vmatpush1.msra.mxu0 0.0
    %193 = vmatprep.mubr.f32.mxu0 0.0
    %194 = vmatmul.mubr.f32.gmra.mrb[0].mxu0 %v127
    %v195 = vpop.f32.mrb[0].mxu0
    %v196 = vadd.f32 %v123, %v195
    %v197 = vpop.f32.mrb[0].mxu0
    %198 = vdwg.mxu0
    %199 = vst [vmem:[#allocation2] sm:$0x1] %v196
    %200 = vst [vmem:[#allocation4 - $0x1] sm:$0x2] %v196
    %201 = vst [vmem:[#allocation6 - $0x2] sm:$0x4] %v196
    // Predicated region
    $region22: #{meta_model_forward_fm.1} parent=1 // pred_check
      _
    $region23: #{meta_model_forward_fm.1} parent=1 // pred_check_branch
      %203 = sbr.rel (0) target = $region25
    $region24: #{meta_model_forward_fm.1} parent=1 // pred_region
      %s205 = ssub.s32 16, 16
      %206 = vsyncadd [#allocation3], %s205
      %s208 = sshll.u32 [#allocation2], 4
      %s209 = int_to_ptr.vmem [resolvable:$true] %s208
      %211 = dma.vmem_to_hbm [thread:$0]  %s209, 16, %s5, [#allocation3]
    $region25: #{meta_model_forward_fm.1} parent=1 // pred_fallthru
      _
    // Predicated region
    $region26: #{meta_model_forward_fm.1} parent=1 // pred_check
      _
    $region27: #{meta_model_forward_fm.1} parent=1 // pred_check_branch
      %213 = sbr.rel (0) target = $region29
    $region28: #{meta_model_forward_fm.1} parent=1 // pred_region
      %s215 = ssub.s32 16, 16
      %216 = vsyncadd [#allocation5], %s215
      %s218 = sshll.u32 [#allocation4], 4
      %s219 = int_to_ptr.vmem [resolvable:$true] %s218
      %221 = dma.vmem_to_hbm [thread:$0]  %s219, 16, %s6, [#allocation5]
    $region29: #{meta_model_forward_fm.1} parent=1 // pred_fallthru
      _
    // Predicated region
    $region30: #{meta_model_forward_fm.1} parent=1 // pred_check
      _
    $region31: #{meta_model_forward_fm.1} parent=1 // pred_check_branch
      %223 = sbr.rel (0) target = $region33
    $region32: #{meta_model_forward_fm.1} parent=1 // pred_region
      %s225 = ssub.s32 16, 16
      %226 = vsyncadd [#allocation5], %s225
      %s228 = sshll.u32 [#allocation6], 4
      %s229 = int_to_ptr.vmem [resolvable:$true] %s228
      %231 = dma.vmem_to_hbm [thread:$0]  %s229, 16, %s7, [#allocation5]
    $region33: #{meta_model_forward_fm.1} parent=1 // pred_fallthru
      _
    // Predicated region
    $region34: #{meta_model_forward_fm.1} parent=1 // pred_check
      _
    $region35: #{meta_model_forward_fm.1} parent=1 // pred_check_branch
      %233 = sbr.rel (0) target = $region37
    $region36: #{meta_model_forward_fm.1} parent=1 // pred_region
      %234 = dma.done [#allocation3], 16
    $region37: #{meta_model_forward_fm.1} parent=1 // pred_fallthru
      _
    // Predicated region
    $region38: #{meta_model_forward_fm.1} parent=1 // pred_check
      _
    $region39: #{meta_model_forward_fm.1} parent=1 // pred_check_branch
      %236 = sbr.rel (0) target = $region41
    $region40: #{meta_model_forward_fm.1} parent=1 // pred_region
      %237 = dma.done [#allocation5], 16
    $region41: #{meta_model_forward_fm.1} parent=1 // pred_fallthru
      _
    // Predicated region
    $region42: #{meta_model_forward_fm.1} parent=1 // pred_check
      _
    $region43: #{meta_model_forward_fm.1} parent=1 // pred_check_branch
      %239 = sbr.rel (0) target = $region45
    $region44: #{meta_model_forward_fm.1} parent=1 // pred_region
      %240 = dma.done [#allocation5], 16
    $region45: #{meta_model_forward_fm.1} parent=1 // pred_fallthru
      _
    %241 = vsyncpa [#allocation3], 1
    %242 = vsyncpa [#allocation5], 1

</llo_original>
